<compile_context>
chip_gen: v6e
topology: v6e:2x2x1
jax: 0.10.0
libtpu: 0.0.40
codegen_flags: <defaults>
</compile_context>

<pallas_src>
import functools
import math

import jax
import jax.numpy as jnp
from jax.experimental import pallas as pl
from jax.experimental.pallas import tpu as pltpu


def _round_up(x, m):
    return (x + m - 1) // m * m


# -----------------------------------------------------------------------------
# Kernel
# -----------------------------------------------------------------------------
def lstm_kernel(x_ref, w_ref, b_ref, wo_ref, bo_ref, h0_ref, c0_ref,
                y_ref, hout_ref, cout_ref):
    """Single-timestep stacked-LSTM forward, everything resident in VMEM.

    Shapes (float32; Hp = padded hidden = 128, Op = padded output = 128):
      x_ref   : (B, Hp)         input, zero-padded from I lanes
      w_ref   : (L, 2*Hp, 4*Hp) fused [h_in ; h_prev] -> gates weights
                                (embed Linear folded into layer 0's h_in rows)
      b_ref   : (L, 1, 4*Hp)    fused gate biases (b_ih + b_hh, embed bias folded)
      wo_ref  : (Hp, Op)        output Linear weight (transposed, zero-padded)
      bo_ref  : (1, Op)
      h0_ref, c0_ref : (L, B, Hp)   persistent state (aliased to hout/cout)
      y_ref   : (B, Op)
      hout_ref, cout_ref : (L, B, Hp)
    """
    Hp = x_ref.shape[1]
    n_layers = w_ref.shape[0]

    h_in = x_ref[...]
    for l in range(n_layers):                      # static layer count -> unrolled
        h_prev = h0_ref[l]
        c_prev = c0_ref[l]
        # one fused MXU matmul per layer (was two); concat of two lane-dense
        # (B, 128) vregs is a cheap side-by-side placement, no relayout.
        xh = jnp.concatenate([h_in, h_prev], axis=-1)
        gates = jnp.dot(xh, w_ref[l], preferred_element_type=jnp.float32) + b_ref[l]
        # torch.nn.LSTMCell gate order [i, f, g, o]; slices are 128-lane aligned.
        i_g = jax.nn.sigmoid(gates[:, 0 * Hp:1 * Hp])
        f_g = jax.nn.sigmoid(gates[:, 1 * Hp:2 * Hp])
        g_g = jnp.tanh(gates[:, 2 * Hp:3 * Hp])
        o_g = jax.nn.sigmoid(gates[:, 3 * Hp:4 * Hp])
        c_new = f_g * c_prev + i_g * g_g
        h_new = o_g * jnp.tanh(c_new)
        hout_ref[l] = h_new
        cout_ref[l] = c_new
        h_in = h_new

    # output head: Linear + Tanh (padded lanes stay exactly 0 -> tanh(0) = 0)
    y_ref[...] = jnp.tanh(
        jnp.dot(h_in, wo_ref[...], preferred_element_type=jnp.float32) + bo_ref[...])


# -----------------------------------------------------------------------------
# Wrappers
# -----------------------------------------------------------------------------
def _pallas_forward(x_pad, w_cat, b_cat, wo_p, bo_p, h0, c0):
    B, Hp = x_pad.shape
    L = w_cat.shape[0]
    Op = wo_p.shape[1]
    vmem = functools.partial(pl.BlockSpec, memory_space=pltpu.MemorySpace.VMEM)
    return pl.pallas_call(
        lstm_kernel,
        out_shape=(
            jax.ShapeDtypeStruct((B, Op), jnp.float32),
            jax.ShapeDtypeStruct((L, B, Hp), jnp.float32),
            jax.ShapeDtypeStruct((L, B, Hp), jnp.float32),
        ),
        in_specs=[vmem() for _ in range(7)],
        out_specs=(vmem(), vmem(), vmem()),
        # persistent hidden state is updated in place: h0 -> h_out, c0 -> c_out
        input_output_aliases={5: 1, 6: 2},
    )(x_pad, w_cat, b_cat, wo_p, bo_p, h0, c0)


def lstm_step(x, kparams, h0, c0, *, output_size):
    """One forward call of the module; returns (y, h_new, c_new) with padded state."""
    w_cat, b_cat, wo_p, bo_p = kparams
    Hp = h0.shape[-1]
    x_pad = jnp.pad(x, ((0, 0), (0, Hp - x.shape[1])))
    y_pad, h_new, c_new = _pallas_forward(x_pad, w_cat, b_cat, wo_p, bo_p, h0, c0)
    return y_pad[:, :output_size], h_new, c_new


def prepare_kernel_params(params, input_size, hidden_size, output_size):
    """One-time prep: fold embed into layer 0, fuse ih/hh weights + biases, and
    zero-pad hidden/output dims to 128-lane multiples.  The per-call path only
    runs the kernel."""
    we, be, wih, whh, bih, bhh, wo, bo = params
    I, H, O = input_size, hidden_size, output_size
    L = wih.shape[0]
    Hp = _round_up(max(H, 128), 128)
    Op = _round_up(max(O, 128), 128)
    hi = jax.lax.Precision.HIGHEST

    def pad_gate_cols(w):
        # (..., 4H) -> (..., 4Hp): each H-wide gate chunk placed at the start of
        # its Hp-wide slot (keeps torch [i, f, g, o] gate order, 128-lane aligned)
        cfg = [(0, 0)] * (w.ndim - 1) + [(0, Hp - H)]
        return jnp.concatenate(
            [jnp.pad(w[..., k * H:(k + 1) * H], cfg) for k in range(4)], axis=-1)

    # fold embed Linear into layer 0
    w0x = jnp.dot(we, wih[0], precision=hi)                     # (I, 4H)
    b0 = jnp.dot(be, wih[0], precision=hi) + bih[0] + bhh[0]    # (1, 4H)

    w_cat = jnp.zeros((L, 2 * Hp, 4 * Hp), jnp.float32)
    b_cat = jnp.zeros((L, 1, 4 * Hp), jnp.float32)
    # layer 0: rows [0:I] act on (padded) x, rows [Hp:Hp+H] act on h_prev
    w_cat = w_cat.at[0, :I, :].set(pad_gate_cols(w0x))
    w_cat = w_cat.at[0, Hp:Hp + H, :].set(pad_gate_cols(whh[0]))
    b_cat = b_cat.at[0].set(pad_gate_cols(b0))
    # layers 1..L-1: rows [0:H] act on h_in, rows [Hp:Hp+H] act on h_prev
    for l in range(1, L):
        w_cat = w_cat.at[l, :H, :].set(pad_gate_cols(wih[l]))
        w_cat = w_cat.at[l, Hp:Hp + H, :].set(pad_gate_cols(whh[l]))
        b_cat = b_cat.at[l].set(pad_gate_cols(bih[l] + bhh[l]))

    wo_p = jnp.zeros((Hp, Op), jnp.float32).at[:H, :O].set(wo)
    bo_p = jnp.zeros((1, Op), jnp.float32).at[:, :O].set(bo)
    return (w_cat, b_cat, wo_p, bo_p), Hp


# -----------------------------------------------------------------------------
# Init + pure-JAX reference (torch semantics)
# -----------------------------------------------------------------------------
def init_params(key, input_size, output_size, hidden_size, n_layers):
    """Deterministic init mimicking PyTorch default U(-1/sqrt(fan_in), 1/sqrt(fan_in))."""
    ks = jax.random.split(key, 8)
    I, H, O, L = input_size, hidden_size, output_size, n_layers

    def uni(k, shape, fan_in):
        bound = 1.0 / math.sqrt(fan_in)
        return jax.random.uniform(k, shape, jnp.float32, -bound, bound)

    we = uni(ks[0], (I, H), I)            # embed Linear weight, stored transposed
    be = uni(ks[1], (1, H), I)
    wih = uni(ks[2], (L, H, 4 * H), H)    # LSTMCell W_ih, stored transposed
    whh = uni(ks[3], (L, H, 4 * H), H)    # LSTMCell W_hh, stored transposed
    bih = uni(ks[4], (L, 1, 4 * H), H)
    bhh = uni(ks[5], (L, 1, 4 * H), H)
    wo = uni(ks[6], (H, O), H)            # output Linear weight, stored transposed
    bo = uni(ks[7], (1, O), H)
    return we, be, wih, whh, bih, bhh, wo, bo


def reference_forward(x, params, hidden):
    """Pure-JAX reference matching torch semantics, for correctness check."""
    we, be, wih, whh, bih, bhh, wo, bo = params
    h0, c0 = hidden
    H = we.shape[1]
    h_in = x @ we + be
    h_out, c_out = [], []
    for l in range(wih.shape[0]):
        gates = h_in @ wih[l] + bih[l] + h0[l] @ whh[l] + bhh[l]
        i_g = jax.nn.sigmoid(gates[:, 0 * H:1 * H])
        f_g = jax.nn.sigmoid(gates[:, 1 * H:2 * H])
        g_g = jnp.tanh(gates[:, 2 * H:3 * H])
        o_g = jax.nn.sigmoid(gates[:, 3 * H:4 * H])
        c = f_g * c0[l] + i_g * g_g
        h = o_g * jnp.tanh(c)
        h_out.append(h)
        c_out.append(c)
        h_in = h
    y = jnp.tanh(h_in @ wo + bo)
    return y, (jnp.stack(h_out), jnp.stack(c_out))


if __name__ == "__main__":
    # small shapes consistent with the module's forward
    batch_size = 8
    input_size = 16
    hidden_size = 32
    output_size = 8
    n_layers = 2

    key = jax.random.PRNGKey(0)
    k_x, k_p = jax.random.split(key)
    x = jax.random.normal(k_x, (batch_size, input_size), jnp.float32)
    params = init_params(k_p, input_size, output_size, hidden_size, n_layers)

    kparams, Hp = prepare_kernel_params(params, input_size, hidden_size, output_size)

    # init_hidden(): persistent zero state, kept in the padded kernel layout
    h0 = jnp.zeros((n_layers, batch_size, Hp), jnp.float32)
    c0 = jnp.zeros((n_layers, batch_size, Hp), jnp.float32)

    fwd = jax.jit(functools.partial(lstm_step, output_size=output_size),
                  donate_argnums=(2, 3))
    y, h_new, c_new = fwd(x, kparams, h0, c0)
    jax.block_until_ready(y)

    # pure-JAX reference in the original (unpadded) parameterisation
    hidden_ref = (jnp.zeros((n_layers, batch_size, hidden_size), jnp.float32),
                  jnp.zeros((n_layers, batch_size, hidden_size), jnp.float32))
    y_ref, (h_ref, c_ref) = reference_forward(x, params, hidden_ref)

    assert jnp.allclose(y, y_ref, atol=1e-4), "output mismatch vs reference"
    assert jnp.allclose(h_new[:, :, :hidden_size], h_ref, atol=1e-4), "hidden h mismatch"
    assert jnp.allclose(c_new[:, :, :hidden_size], c_ref, atol=1e-4), "hidden c mismatch"
    # padded lanes must remain exactly zero so the padding stays exact across steps
    assert not jnp.any(h_new[:, :, hidden_size:]), "padded h lanes not zero"
    assert not jnp.any(c_new[:, :, hidden_size:]), "padded c lanes not zero"

    print("KERNEL_OK")
</pallas_src>

<mosaic_0001>
module attributes {stable_mosaic.version = 11 : i64} {
  func.func @lstm_kernel(%arg0: memref<8x128xf32, #tpu.memory_space<vmem>>, %arg1: memref<2x256x512xf32, #tpu.memory_space<vmem>>, %arg2: memref<2x1x512xf32, #tpu.memory_space<vmem>>, %arg3: memref<128x128xf32, #tpu.memory_space<vmem>>, %arg4: memref<1x128xf32, #tpu.memory_space<vmem>>, %arg5: memref<2x8x128xf32, #tpu.memory_space<vmem>>, %arg6: memref<2x8x128xf32, #tpu.memory_space<vmem>>, %arg7: memref<8x128xf32, #tpu.memory_space<vmem>>, %arg8: memref<2x8x128xf32, #tpu.memory_space<vmem>>, %arg9: memref<2x8x128xf32, #tpu.memory_space<vmem>>) attributes {dimension_semantics = [], scalar_prefetch = 0 : i64, scratch_operands = 0 : i64, tpu.core_type = #tpu.core_type<tc>} {
    %c0 = arith.constant 0 : index
    %c0_0 = arith.constant 0 : index
    %0 = vector.load %arg0[%c0, %c0_0] : memref<8x128xf32, #tpu.memory_space<vmem>>, vector<8x128xf32>
    %c0_1 = arith.constant 0 : index
    %c0_2 = arith.constant 0 : index
    %c0_3 = arith.constant 0 : index
    %1 = vector.load %arg5[%c0_1, %c0_2, %c0_3] : memref<2x8x128xf32, #tpu.memory_space<vmem>>, vector<1x8x128xf32>
    %2 = vector.shape_cast %1 : vector<1x8x128xf32> to vector<8x128xf32>
    %c0_4 = arith.constant 0 : index
    %c0_5 = arith.constant 0 : index
    %c0_6 = arith.constant 0 : index
    %3 = vector.load %arg6[%c0_4, %c0_5, %c0_6] : memref<2x8x128xf32, #tpu.memory_space<vmem>>, vector<1x8x128xf32>
    %4 = vector.shape_cast %3 : vector<1x8x128xf32> to vector<8x128xf32>
    %5 = tpu.concatenate %0, %2 in 1 : vector<8x128xf32>, vector<8x128xf32> -> vector<8x256xf32>
    %c0_7 = arith.constant 0 : index
    %c0_8 = arith.constant 0 : index
    %c0_9 = arith.constant 0 : index
    %6 = vector.load %arg1[%c0_7, %c0_8, %c0_9] : memref<2x256x512xf32, #tpu.memory_space<vmem>>, vector<1x256x512xf32>
    %7 = vector.shape_cast %6 : vector<1x256x512xf32> to vector<256x512xf32>
    %cst = arith.constant dense<0.000000e+00> : vector<8x512xf32>
    %8 = tpu.matmul %5, %7, %cst {dimension_numbers = #tpu.dot_dimension_numbers<[1], [0], [0], [1], [0, 0, 1, 1], [], []>} : vector<8x256xf32>, vector<256x512xf32>, vector<8x512xf32> -> vector<8x512xf32>
    %c0_10 = arith.constant 0 : index
    %c0_11 = arith.constant 0 : index
    %c0_12 = arith.constant 0 : index
    %9 = vector.load %arg2[%c0_10, %c0_11, %c0_12] : memref<2x1x512xf32, #tpu.memory_space<vmem>>, vector<1x1x512xf32>
    %10 = vector.shape_cast %9 : vector<1x1x512xf32> to vector<1x512xf32>
    %11 = vector.broadcast %10 : vector<1x512xf32> to vector<8x512xf32>
    %12 = arith.addf %8, %11 : vector<8x512xf32>
    %13 = vector.extract_strided_slice %12 {offsets = [0, 0], sizes = [8, 128], strides = [1, 1]} : vector<8x512xf32> to vector<8x128xf32>
    %14 = arith.negf %13 : vector<8x128xf32>
    %15 = math.exp %14 : vector<8x128xf32>
    %cst_13 = arith.constant 1.000000e+00 : f32
    %16 = vector.broadcast %cst_13 : f32 to vector<8x128xf32>
    %17 = arith.addf %16, %15 : vector<8x128xf32>
    %18 = arith.divf %16, %17 : vector<8x128xf32>
    %19 = vector.extract_strided_slice %12 {offsets = [0, 128], sizes = [8, 128], strides = [1, 1]} : vector<8x512xf32> to vector<8x128xf32>
    %20 = arith.negf %19 : vector<8x128xf32>
    %21 = math.exp %20 : vector<8x128xf32>
    %cst_14 = arith.constant 1.000000e+00 : f32
    %22 = vector.broadcast %cst_14 : f32 to vector<8x128xf32>
    %23 = arith.addf %22, %21 : vector<8x128xf32>
    %24 = arith.divf %22, %23 : vector<8x128xf32>
    %25 = vector.extract_strided_slice %12 {offsets = [0, 256], sizes = [8, 128], strides = [1, 1]} : vector<8x512xf32> to vector<8x128xf32>
    %26 = math.tanh %25 : vector<8x128xf32>
    %27 = vector.extract_strided_slice %12 {offsets = [0, 384], sizes = [8, 128], strides = [1, 1]} : vector<8x512xf32> to vector<8x128xf32>
    %28 = arith.negf %27 : vector<8x128xf32>
    %29 = math.exp %28 : vector<8x128xf32>
    %cst_15 = arith.constant 1.000000e+00 : f32
    %30 = vector.broadcast %cst_15 : f32 to vector<8x128xf32>
    %31 = arith.addf %30, %29 : vector<8x128xf32>
    %32 = arith.divf %30, %31 : vector<8x128xf32>
    %33 = arith.mulf %24, %4 : vector<8x128xf32>
    %34 = arith.mulf %18, %26 : vector<8x128xf32>
    %35 = arith.addf %33, %34 : vector<8x128xf32>
    %36 = math.tanh %35 : vector<8x128xf32>
    %37 = arith.mulf %32, %36 : vector<8x128xf32>
    %c0_16 = arith.constant 0 : index
    %c0_17 = arith.constant 0 : index
    %c0_18 = arith.constant 0 : index
    %38 = vector.load %arg8[%c0_16, %c0_17, %c0_18] : memref<2x8x128xf32, #tpu.memory_space<vmem>>, vector<1x8x128xf32>
    %39 = vector.shape_cast %38 : vector<1x8x128xf32> to vector<8x128xf32>
    %40 = vector.shape_cast %37 : vector<8x128xf32> to vector<1x8x128xf32>
    tpu.vector_store %arg8[%c0_16, %c0_17, %c0_18], %40 {strides = array<i32>} : memref<2x8x128xf32, #tpu.memory_space<vmem>>, vector<1x8x128xf32>,
    %c0_19 = arith.constant 0 : index
    %c0_20 = arith.constant 0 : index
    %c0_21 = arith.constant 0 : index
    %41 = vector.load %arg9[%c0_19, %c0_20, %c0_21] : memref<2x8x128xf32, #tpu.memory_space<vmem>>, vector<1x8x128xf32>
    %42 = vector.shape_cast %41 : vector<1x8x128xf32> to vector<8x128xf32>
    %43 = vector.shape_cast %35 : vector<8x128xf32> to vector<1x8x128xf32>
    tpu.vector_store %arg9[%c0_19, %c0_20, %c0_21], %43 {strides = array<i32>} : memref<2x8x128xf32, #tpu.memory_space<vmem>>, vector<1x8x128xf32>,
    %c1 = arith.constant 1 : index
    %c0_22 = arith.constant 0 : index
    %c0_23 = arith.constant 0 : index
    %44 = vector.load %arg5[%c1, %c0_22, %c0_23] : memref<2x8x128xf32, #tpu.memory_space<vmem>>, vector<1x8x128xf32>
    %45 = vector.shape_cast %44 : vector<1x8x128xf32> to vector<8x128xf32>
    %c1_24 = arith.constant 1 : index
    %c0_25 = arith.constant 0 : index
    %c0_26 = arith.constant 0 : index
    %46 = vector.load %arg6[%c1_24, %c0_25, %c0_26] : memref<2x8x128xf32, #tpu.memory_space<vmem>>, vector<1x8x128xf32>
    %47 = vector.shape_cast %46 : vector<1x8x128xf32> to vector<8x128xf32>
    %48 = tpu.concatenate %37, %45 in 1 : vector<8x128xf32>, vector<8x128xf32> -> vector<8x256xf32>
    %c1_27 = arith.constant 1 : index
    %c0_28 = arith.constant 0 : index
    %c0_29 = arith.constant 0 : index
    %49 = vector.load %arg1[%c1_27, %c0_28, %c0_29] : memref<2x256x512xf32, #tpu.memory_space<vmem>>, vector<1x256x512xf32>
    %50 = vector.shape_cast %49 : vector<1x256x512xf32> to vector<256x512xf32>
    %cst_30 = arith.constant dense<0.000000e+00> : vector<8x512xf32>
    %51 = tpu.matmul %48, %50, %cst_30 {dimension_numbers = #tpu.dot_dimension_numbers<[1], [0], [0], [1], [0, 0, 1, 1], [], []>} : vector<8x256xf32>, vector<256x512xf32>, vector<8x512xf32> -> vector<8x512xf32>
    %c1_31 = arith.constant 1 : index
    %c0_32 = arith.constant 0 : index
    %c0_33 = arith.constant 0 : index
    %52 = vector.load %arg2[%c1_31, %c0_32, %c0_33] : memref<2x1x512xf32, #tpu.memory_space<vmem>>, vector<1x1x512xf32>
    %53 = vector.shape_cast %52 : vector<1x1x512xf32> to vector<1x512xf32>
    %54 = vector.broadcast %53 : vector<1x512xf32> to vector<8x512xf32>
    %55 = arith.addf %51, %54 : vector<8x512xf32>
    %56 = vector.extract_strided_slice %55 {offsets = [0, 0], sizes = [8, 128], strides = [1, 1]} : vector<8x512xf32> to vector<8x128xf32>
    %57 = arith.negf %56 : vector<8x128xf32>
    %58 = math.exp %57 : vector<8x128xf32>
    %cst_34 = arith.constant 1.000000e+00 : f32
    %59 = vector.broadcast %cst_34 : f32 to vector<8x128xf32>
    %60 = arith.addf %59, %58 : vector<8x128xf32>
    %61 = arith.divf %59, %60 : vector<8x128xf32>
    %62 = vector.extract_strided_slice %55 {offsets = [0, 128], sizes = [8, 128], strides = [1, 1]} : vector<8x512xf32> to vector<8x128xf32>
    %63 = arith.negf %62 : vector<8x128xf32>
    %64 = math.exp %63 : vector<8x128xf32>
    %cst_35 = arith.constant 1.000000e+00 : f32
    %65 = vector.broadcast %cst_35 : f32 to vector<8x128xf32>
    %66 = arith.addf %65, %64 : vector<8x128xf32>
    %67 = arith.divf %65, %66 : vector<8x128xf32>
    %68 = vector.extract_strided_slice %55 {offsets = [0, 256], sizes = [8, 128], strides = [1, 1]} : vector<8x512xf32> to vector<8x128xf32>
    %69 = math.tanh %68 : vector<8x128xf32>
    %70 = vector.extract_strided_slice %55 {offsets = [0, 384], sizes = [8, 128], strides = [1, 1]} : vector<8x512xf32> to vector<8x128xf32>
    %71 = arith.negf %70 : vector<8x128xf32>
    %72 = math.exp %71 : vector<8x128xf32>
    %cst_36 = arith.constant 1.000000e+00 : f32
    %73 = vector.broadcast %cst_36 : f32 to vector<8x128xf32>
    %74 = arith.addf %73, %72 : vector<8x128xf32>
    %75 = arith.divf %73, %74 : vector<8x128xf32>
    %76 = arith.mulf %67, %47 : vector<8x128xf32>
    %77 = arith.mulf %61, %69 : vector<8x128xf32>
    %78 = arith.addf %76, %77 : vector<8x128xf32>
    %79 = math.tanh %78 : vector<8x128xf32>
    %80 = arith.mulf %75, %79 : vector<8x128xf32>
    %c1_37 = arith.constant 1 : index
    %c0_38 = arith.constant 0 : index
    %c0_39 = arith.constant 0 : index
    %81 = vector.load %arg8[%c1_37, %c0_38, %c0_39] : memref<2x8x128xf32, #tpu.memory_space<vmem>>, vector<1x8x128xf32>
    %82 = vector.shape_cast %81 : vector<1x8x128xf32> to vector<8x128xf32>
    %83 = vector.shape_cast %80 : vector<8x128xf32> to vector<1x8x128xf32>
    tpu.vector_store %arg8[%c1_37, %c0_38, %c0_39], %83 {strides = array<i32>} : memref<2x8x128xf32, #tpu.memory_space<vmem>>, vector<1x8x128xf32>,
    %c1_40 = arith.constant 1 : index
    %c0_41 = arith.constant 0 : index
    %c0_42 = arith.constant 0 : index
    %84 = vector.load %arg9[%c1_40, %c0_41, %c0_42] : memref<2x8x128xf32, #tpu.memory_space<vmem>>, vector<1x8x128xf32>
    %85 = vector.shape_cast %84 : vector<1x8x128xf32> to vector<8x128xf32>
    %86 = vector.shape_cast %78 : vector<8x128xf32> to vector<1x8x128xf32>
    tpu.vector_store %arg9[%c1_40, %c0_41, %c0_42], %86 {strides = array<i32>} : memref<2x8x128xf32, #tpu.memory_space<vmem>>, vector<1x8x128xf32>,
    %c0_43 = arith.constant 0 : index
    %c0_44 = arith.constant 0 : index
    %87 = vector.load %arg3[%c0_43, %c0_44] : memref<128x128xf32, #tpu.memory_space<vmem>>, vector<128x128xf32>
    %cst_45 = arith.constant dense<0.000000e+00> : vector<8x128xf32>
    %88 = tpu.matmul %80, %87, %cst_45 {dimension_numbers = #tpu.dot_dimension_numbers<[1], [0], [0], [1], [0, 0, 1, 1], [], []>} : vector<8x128xf32>, vector<128x128xf32>, vector<8x128xf32> -> vector<8x128xf32>
    %c0_46 = arith.constant 0 : index
    %c0_47 = arith.constant 0 : index
    %89 = vector.load %arg4[%c0_46, %c0_47] : memref<1x128xf32, #tpu.memory_space<vmem>>, vector<1x128xf32>
    %90 = vector.broadcast %89 : vector<1x128xf32> to vector<8x128xf32>
    %91 = arith.addf %88, %90 : vector<8x128xf32>
    %92 = math.tanh %91 : vector<8x128xf32>
    %c0_48 = arith.constant 0 : index
    %c0_49 = arith.constant 0 : index
    %93 = vector.load %arg7[%c0_48, %c0_49] : memref<8x128xf32, #tpu.memory_space<vmem>>, vector<8x128xf32>
    tpu.vector_store %arg7[%c0_48, %c0_49], %92 {strides = array<i32>} : memref<8x128xf32, #tpu.memory_space<vmem>>, vector<8x128xf32>,
    return
  }
}

</mosaic_0001>

<llo_original>
// kernel: lstm_step.1
$region0: #{lstm_step.1}
  #allocation0 [shape = 'u32[]', space=smem, size = 0x4, offset = 0x4, fixed_abs, tag = 'smem constant byte address 0x4 - core index']
  #allocation1 [shape = 'u32[144,128]{1,0:T(1,128)}', space=vmem, size = 0x12000, scoped, tag = 'internal scratch']
  %s0 = inlined_call_operand.vmem [shape: f32[8,128], index: 0, kind: input, shape index: {}]
  %s1 = inlined_call_operand.hbm [shape: f32[2,256,512], index: 1, kind: input, shape index: {}]
  %s2 = inlined_call_operand.vmem [shape: f32[2,1,512], index: 2, kind: input, shape index: {}]
  %s3 = inlined_call_operand.hbm [shape: f32[128,128], index: 3, kind: input, shape index: {}]
  %s4 = inlined_call_operand.vmem [shape: f32[1,128], index: 4, kind: input, shape index: {}]
  %s5 = inlined_call_operand.vmem [shape: f32[2,8,128], index: 5, kind: input, shape index: {}, may-alias: {5,8}]
  %s6 = inlined_call_operand.hbm [shape: f32[2,8,128], index: 6, kind: input, shape index: {}, may-alias: {6,9}]
  %s7 = inlined_call_operand.hbm [shape: f32[8,128], index: 7, kind: output, shape index: {0}]
  %s8 = inlined_call_operand.vmem [shape: f32[2,8,128], index: 8, kind: output, shape index: {1}, may-alias: {5,8}]
  %s9 = inlined_call_operand.hbm [shape: f32[2,8,128], index: 9, kind: output, shape index: {2}, may-alias: {6,9}]
  %10 = xla_tuple %s7, %s8, %s9
  %s11 = sld [smem:[#allocation0]]
  $region66: #{lstm_step.1} parent=0
    _
  %s13 = ssub.s32 1, %s11
  %s14 = scalar_select 0, %s13, %s11
  $region1: #{lstm_step.1} parent=0
    #allocation2 [shape = 'u8[1048576]{0}', space=vmem, size = 0x100000, scoped, tag = 'input window, operand 1, single buffered']
    #allocation3 [shape = 's32[1]{0}', space=sflag, size = 0x4, scoped, tag = 'scoped memory for lstm_step.1']
    #allocation4 [shape = 's32[1]{0}', space=sflag, size = 0x4, scoped, tag = 'scoped memory for lstm_step.1']
    #allocation5 [shape = 'u8[65536]{0}', space=vmem, size = 0x10000, scoped, tag = 'input window, operand 3, single buffered']
    #allocation6 [shape = 's32[1]{0}', space=sflag, size = 0x4, scoped, tag = 'scoped memory for lstm_step.1']
    #allocation7 [shape = 'u8[8192]{0}', space=vmem, size = 0x2000, scoped, tag = 'input window, operand 6, single buffered']
    #allocation8 [shape = 'u8[4096]{0}', space=vmem, size = 0x1000, scoped, tag = 'output window, operand 0, single buffered']
    #allocation9 [shape = 'u8[8192]{0}', space=vmem, size = 0x2000, scoped, tag = 'output window, operand 2, single buffered']
    #allocation10 [shape = 's32[1]{0}', space=sflag, size = 0x4, scoped, tag = 'scoped memory for lstm_step.1']
    %15 = vsyncpa [#allocation3], 0
    %16 = vsyncpa [#allocation6], 0
    %17 = vsyncpa [#allocation4], 0
    %18 = vsyncpa [#allocation10], 0
    // Predicated region
    $region2: #{lstm_step.1} parent=1 // pred_check
      _
    $region3: #{lstm_step.1} parent=1 // pred_check_branch
      %20 = sbr.rel (0) target = $region5
    $region4: #{lstm_step.1} parent=1 // pred_region
      _
    $region5: #{lstm_step.1} parent=1 // pred_fallthru
      _
    // Predicated region
    $region6: #{lstm_step.1} parent=1 // pred_check
      _
    $region7: #{lstm_step.1} parent=1 // pred_check_branch
      %22 = sbr.rel (0) target = $region9
    $region8: #{lstm_step.1} parent=1 // pred_region
      %s24 = ssub.s32 32768, 32768
      %25 = vsyncadd [#allocation3], %s24
      %s26 = sshll.u32 [#allocation2], 4
      %s27 = int_to_ptr.vmem [resolvable:$true] %s26
      %32 = dma.hbm_to_vmem [thread:$0]  %s1, 32768, %s27, [#allocation3], 512, 512, 32
    $region9: #{lstm_step.1} parent=1 // pred_fallthru
      _
    // Predicated region
    $region10: #{lstm_step.1} parent=1 // pred_check
      _
    $region11: #{lstm_step.1} parent=1 // pred_check_branch
      %34 = sbr.rel (0) target = $region13
    $region12: #{lstm_step.1} parent=1 // pred_region
      _
    $region13: #{lstm_step.1} parent=1 // pred_fallthru
      _
    // Predicated region
    $region14: #{lstm_step.1} parent=1 // pred_check
      _
    $region15: #{lstm_step.1} parent=1 // pred_check_branch
      %36 = sbr.rel (0) target = $region17
    $region16: #{lstm_step.1} parent=1 // pred_region
      %s38 = ssub.s32 2048, 2048
      %39 = vsyncadd [#allocation6], %s38
      %s40 = sshll.u32 [#allocation5], 4
      %s41 = int_to_ptr.vmem [resolvable:$true] %s40
      %46 = dma.hbm_to_vmem [thread:$0]  %s3, 2048, %s41, [#allocation6], 128, 128, 8
    $region17: #{lstm_step.1} parent=1 // pred_fallthru
      _
    // Predicated region
    $region18: #{lstm_step.1} parent=1 // pred_check
      _
    $region19: #{lstm_step.1} parent=1 // pred_check_branch
      %48 = sbr.rel (0) target = $region21
    $region20: #{lstm_step.1} parent=1 // pred_region
      _
    $region21: #{lstm_step.1} parent=1 // pred_fallthru
      _
    // Predicated region
    $region22: #{lstm_step.1} parent=1 // pred_check
      _
    $region23: #{lstm_step.1} parent=1 // pred_check_branch
      %50 = sbr.rel (0) target = $region25
    $region24: #{lstm_step.1} parent=1 // pred_region
      _
    $region25: #{lstm_step.1} parent=1 // pred_fallthru
      _
    // Predicated region
    $region26: #{lstm_step.1} parent=1 // pred_check
      _
    $region27: #{lstm_step.1} parent=1 // pred_check_branch
      %52 = sbr.rel (0) target = $region29
    $region28: #{lstm_step.1} parent=1 // pred_region
      %s54 = ssub.s32 256, 256
      %55 = vsyncadd [#allocation6], %s54
      %s56 = sshll.u32 [#allocation7], 4
      %s57 = int_to_ptr.vmem [resolvable:$true] %s56
      %62 = dma.hbm_to_vmem [thread:$0]  %s6, 256, %s57, [#allocation6], 128, 128, 8
    $region29: #{lstm_step.1} parent=1 // pred_fallthru
      _
    // Predicated region
    $region30: #{lstm_step.1} parent=1 // pred_check
      _
    $region31: #{lstm_step.1} parent=1 // pred_check_branch
      %64 = sbr.rel (0) target = $region33
    $region32: #{lstm_step.1} parent=1 // pred_region
      %65 = dma.done [#allocation3], 32768
    $region33: #{lstm_step.1} parent=1 // pred_fallthru
      _
    // Predicated region
    $region34: #{lstm_step.1} parent=1 // pred_check
      _
    $region35: #{lstm_step.1} parent=1 // pred_check_branch
      %67 = sbr.rel (0) target = $region37
    $region36: #{lstm_step.1} parent=1 // pred_region
      %68 = dma.done [#allocation6], 2048
    $region37: #{lstm_step.1} parent=1 // pred_fallthru
      _
    // Predicated region
    $region38: #{lstm_step.1} parent=1 // pred_check
      _
    $region39: #{lstm_step.1} parent=1 // pred_check_branch
      %70 = sbr.rel (0) target = $region41
    $region40: #{lstm_step.1} parent=1 // pred_region
      %71 = dma.done [#allocation6], 256
    $region41: #{lstm_step.1} parent=1 // pred_fallthru
      _
    %v72 = vld [vmem:[%s0] sm:$0xff]
    %v73 = vld [vmem:[%s5] sm:$0xff]
    %v74 = vld [vmem:[#allocation7] sm:$0xff]
    %v75 = vld [vmem:[#allocation2] sm:$0xff]
    %v76 = vld [vmem:[#allocation2 + $0x8] sm:$0xff]
    %v77 = vld [vmem:[#allocation2 + $0x10] sm:$0xff]
    %v78 = vld [vmem:[#allocation2 + $0x18] sm:$0xff]
    %v79 = vld [vmem:[#allocation2 + $0x20] sm:$0xff]
    %v80 = vld [vmem:[#allocation2 + $0x28] sm:$0xff]
    %v81 = vld [vmem:[#allocation2 + $0x30] sm:$0xff]
    %v82 = vld [vmem:[#allocation2 + $0x38] sm:$0xff]
    %v83 = vld [vmem:[#allocation2 + $0x40] sm:$0xff]
    %v84 = vld [vmem:[#allocation2 + $0x48] sm:$0xff]
    %v85 = vld [vmem:[#allocation2 + $0x50] sm:$0xff]
    %v86 = vld [vmem:[#allocation2 + $0x58] sm:$0xff]
    %v87 = vld [vmem:[#allocation2 + $0x60] sm:$0xff]
    %v88 = vld [vmem:[#allocation2 + $0x68] sm:$0xff]
    %v89 = vld [vmem:[#allocation2 + $0x70] sm:$0xff]
    %v90 = vld [vmem:[#allocation2 + $0x78] sm:$0xff]
    %v91 = vld [vmem:[#allocation2 + $0x80] sm:$0xff]
    %v92 = vld [vmem:[#allocation2 + $0x88] sm:$0xff]
    %v93 = vld [vmem:[#allocation2 + $0x90] sm:$0xff]
    %v94 = vld [vmem:[#allocation2 + $0x98] sm:$0xff]
    %v95 = vld [vmem:[#allocation2 + $0xa0] sm:$0xff]
    %v96 = vld [vmem:[#allocation2 + $0xa8] sm:$0xff]
    %v97 = vld [vmem:[#allocation2 + $0xb0] sm:$0xff]
    %v98 = vld [vmem:[#allocation2 + $0xb8] sm:$0xff]
    %v99 = vld [vmem:[#allocation2 + $0xc0] sm:$0xff]
    %v100 = vld [vmem:[#allocation2 + $0xc8] sm:$0xff]
    %v101 = vld [vmem:[#allocation2 + $0xd0] sm:$0xff]
    %v102 = vld [vmem:[#allocation2 + $0xd8] sm:$0xff]
    %v103 = vld [vmem:[#allocation2 + $0xe0] sm:$0xff]
    %v104 = vld [vmem:[#allocation2 + $0xe8] sm:$0xff]
    %v105 = vld [vmem:[#allocation2 + $0xf0] sm:$0xff]
    %v106 = vld [vmem:[#allocation2 + $0xf8] sm:$0xff]
    %v107 = vld [vmem:[#allocation2 + $0x100] sm:$0xff]
    %v108 = vld [vmem:[#allocation2 + $0x108] sm:$0xff]
    %v109 = vld [vmem:[#allocation2 + $0x110] sm:$0xff]
    %v110 = vld [vmem:[#allocation2 + $0x118] sm:$0xff]
    %v111 = vld [vmem:[#allocation2 + $0x120] sm:$0xff]
    %v112 = vld [vmem:[#allocation2 + $0x128] sm:$0xff]
    %v113 = vld [vmem:[#allocation2 + $0x130] sm:$0xff]
    %v114 = vld [vmem:[#allocation2 + $0x138] sm:$0xff]
    %v115 = vld [vmem:[#allocation2 + $0x140] sm:$0xff]
    %v116 = vld [vmem:[#allocation2 + $0x148] sm:$0xff]
    %v117 = vld [vmem:[#allocation2 + $0x150] sm:$0xff]
    %v118 = vld [vmem:[#allocation2 + $0x158] sm:$0xff]
    %v119 = vld [vmem:[#allocation2 + $0x160] sm:$0xff]
    %v120 = vld [vmem:[#allocation2 + $0x168] sm:$0xff]
    %v121 = vld [vmem:[#allocation2 + $0x170] sm:$0xff]
    %v122 = vld [vmem:[#allocation2 + $0x178] sm:$0xff]
    %v123 = vld [vmem:[#allocation2 + $0x180] sm:$0xff]
    %v124 = vld [vmem:[#allocation2 + $0x188] sm:$0xff]
    %v125 = vld [vmem:[#allocation2 + $0x190] sm:$0xff]
    %v126 = vld [vmem:[#allocation2 + $0x198] sm:$0xff]
    %v127 = vld [vmem:[#allocation2 + $0x1a0] sm:$0xff]
    %v128 = vld [vmem:[#allocation2 + $0x1a8] sm:$0xff]
    %v129 = vld [vmem:[#allocation2 + $0x1b0] sm:$0xff]
    %v130 = vld [vmem:[#allocation2 + $0x1b8] sm:$0xff]
    %v131 = vld [vmem:[#allocation2 + $0x1c0] sm:$0xff]
    %v132 = vld [vmem:[#allocation2 + $0x1c8] sm:$0xff]
    %v133 = vld [vmem:[#allocation2 + $0x1d0] sm:$0xff]
    %v134 = vld [vmem:[#allocation2 + $0x1d8] sm:$0xff]
    %v135 = vld [vmem:[#allocation2 + $0x1e0] sm:$0xff]
    %v136 = vld [vmem:[#allocation2 + $0x1e8] sm:$0xff]
    %v137 = vld [vmem:[#allocation2 + $0x1f0] sm:$0xff]
    %v138 = vld [vmem:[#allocation2 + $0x1f8] sm:$0xff]
    %v139 = vld [vmem:[#allocation2 + $0x200] sm:$0xff]
    %v140 = vld [vmem:[#allocation2 + $0x208] sm:$0xff]
    %v141 = vld [vmem:[#allocation2 + $0x210] sm:$0xff]
    %v142 = vld [vmem:[#allocation2 + $0x218] sm:$0xff]
    %v143 = vld [vmem:[#allocation2 + $0x220] sm:$0xff]
    %v144 = vld [vmem:[#allocation2 + $0x228] sm:$0xff]
    %v145 = vld [vmem:[#allocation2 + $0x230] sm:$0xff]
    %v146 = vld [vmem:[#allocation2 + $0x238] sm:$0xff]
    %v147 = vld [vmem:[#allocation2 + $0x240] sm:$0xff]
    %v148 = vld [vmem:[#allocation2 + $0x248] sm:$0xff]
    %v149 = vld [vmem:[#allocation2 + $0x250] sm:$0xff]
    %v150 = vld [vmem:[#allocation2 + $0x258] sm:$0xff]
    %v151 = vld [vmem:[#allocation2 + $0x260] sm:$0xff]
    %v152 = vld [vmem:[#allocation2 + $0x268] sm:$0xff]
    %v153 = vld [vmem:[#allocation2 + $0x270] sm:$0xff]
    %v154 = vld [vmem:[#allocation2 + $0x278] sm:$0xff]
    %v155 = vld [vmem:[#allocation2 + $0x280] sm:$0xff]
    %v156 = vld [vmem:[#allocation2 + $0x288] sm:$0xff]
    %v157 = vld [vmem:[#allocation2 + $0x290] sm:$0xff]
    %v158 = vld [vmem:[#allocation2 + $0x298] sm:$0xff]
    %v159 = vld [vmem:[#allocation2 + $0x2a0] sm:$0xff]
    %v160 = vld [vmem:[#allocation2 + $0x2a8] sm:$0xff]
    %v161 = vld [vmem:[#allocation2 + $0x2b0] sm:$0xff]
    %v162 = vld [vmem:[#allocation2 + $0x2b8] sm:$0xff]
    %v163 = vld [vmem:[#allocation2 + $0x2c0] sm:$0xff]
    %v164 = vld [vmem:[#allocation2 + $0x2c8] sm:$0xff]
    %v165 = vld [vmem:[#allocation2 + $0x2d0] sm:$0xff]
    %v166 = vld [vmem:[#allocation2 + $0x2d8] sm:$0xff]
    %v167 = vld [vmem:[#allocation2 + $0x2e0] sm:$0xff]
    %v168 = vld [vmem:[#allocation2 + $0x2e8] sm:$0xff]
    %v169 = vld [vmem:[#allocation2 + $0x2f0] sm:$0xff]
    %v170 = vld [vmem:[#allocation2 + $0x2f8] sm:$0xff]
    %v171 = vld [vmem:[#allocation2 + $0x300] sm:$0xff]
    %v172 = vld [vmem:[#allocation2 + $0x308] sm:$0xff]
    %v173 = vld [vmem:[#allocation2 + $0x310] sm:$0xff]
    %v174 = vld [vmem:[#allocation2 + $0x318] sm:$0xff]
    %v175 = vld [vmem:[#allocation2 + $0x320] sm:$0xff]
    %v176 = vld [vmem:[#allocation2 + $0x328] sm:$0xff]
    %v177 = vld [vmem:[#allocation2 + $0x330] sm:$0xff]
    %v178 = vld [vmem:[#allocation2 + $0x338] sm:$0xff]
    %v179 = vld [vmem:[#allocation2 + $0x340] sm:$0xff]
    %v180 = vld [vmem:[#allocation2 + $0x348] sm:$0xff]
    %v181 = vld [vmem:[#allocation2 + $0x350] sm:$0xff]
    %v182 = vld [vmem:[#allocation2 + $0x358] sm:$0xff]
    %v183 = vld [vmem:[#allocation2 + $0x360] sm:$0xff]
    %v184 = vld [vmem:[#allocation2 + $0x368] sm:$0xff]
    %v185 = vld [vmem:[#allocation2 + $0x370] sm:$0xff]
    %v186 = vld [vmem:[#allocation2 + $0x378] sm:$0xff]
    %v187 = vld [vmem:[#allocation2 + $0x380] sm:$0xff]
    %v188 = vld [vmem:[#allocation2 + $0x388] sm:$0xff]
    %v189 = vld [vmem:[#allocation2 + $0x390] sm:$0xff]
    %v190 = vld [vmem:[#allocation2 + $0x398] sm:$0xff]
    %v191 = vld [vmem:[#allocation2 + $0x3a0] sm:$0xff]
    %v192 = vld [vmem:[#allocation2 + $0x3a8] sm:$0xff]
    %v193 = vld [vmem:[#allocation2 + $0x3b0] sm:$0xff]
    %v194 = vld [vmem:[#allocation2 + $0x3b8] sm:$0xff]
    %v195 = vld [vmem:[#allocation2 + $0x3c0] sm:$0xff]
    %v196 = vld [vmem:[#allocation2 + $0x3c8] sm:$0xff]
    %v197 = vld [vmem:[#allocation2 + $0x3d0] sm:$0xff]
    %v198 = vld [vmem:[#allocation2 + $0x3d8] sm:$0xff]
    %v199 = vld [vmem:[#allocation2 + $0x3e0] sm:$0xff]
    %v200 = vld [vmem:[#allocation2 + $0x3e8] sm:$0xff]
    %v201 = vld [vmem:[#allocation2 + $0x3f0] sm:$0xff]
    %v202 = vld [vmem:[#allocation2 + $0x3f8] sm:$0xff]
    %v203 = vld [vmem:[%s2] sm:$0xf]
    %v205 = vlaneseq
    %v206 = vshrl.u32 %v205, 7
    %v207 = vsub.s32 0, %v206
    %v208 = vrot.slane %v203, %v207
    %v209 = vlaneseq
    %v210 = vshrl.u32 %v209, 7
    %v211 = vsub.s32 1, %v210
    %v212 = vrot.slane %v203, %v211
    %v213 = vlaneseq
    %v214 = vshrl.u32 %v213, 7
    %v215 = vsub.s32 2, %v214
    %v216 = vrot.slane %v203, %v215
    %v217 = vlaneseq
    %v218 = vshrl.u32 %v217, 7
    %v219 = vsub.s32 3, %v218
    %v220 = vrot.slane %v203, %v219
    %225 = vmatprep.subr.mxu0 %v136
    %226 = vmatpush1.msra.mxu0 %v135
    %227 = vmatprep.subr.mxu0 %v132
    %228 = vmatpush1.msra.mxu0 %v131
    %229 = vmatprep.subr.mxu0 %v128
    %230 = vmatpush1.msra.mxu0 %v127
    %231 = vmatprep.subr.mxu0 %v124
    %232 = vmatpush1.msra.mxu0 %v123
    %233 = vmatprep.subr.mxu0 %v120
    %234 = vmatpush1.msra.mxu0 %v119
    %235 = vmatprep.subr.mxu0 %v116
    %236 = vmatpush1.msra.mxu0 %v115
    %237 = vmatprep.subr.mxu0 %v112
    %238 = vmatpush1.msra.mxu0 %v111
    %239 = vmatprep.subr.mxu0 %v108
    %240 = vmatpush1.msra.mxu0 %v107
    %241 = vmatprep.subr.mxu0 %v104
    %242 = vmatpush1.msra.mxu0 %v103
    %243 = vmatprep.subr.mxu0 %v100
    %244 = vmatpush1.msra.mxu0 %v99
    %245 = vmatprep.subr.mxu0 %v96
    %246 = vmatpush1.msra.mxu0 %v95
    %247 = vmatprep.subr.mxu0 %v92
    %248 = vmatpush1.msra.mxu0 %v91
    %249 = vmatprep.subr.mxu0 %v88
    %250 = vmatpush1.msra.mxu0 %v87
    %251 = vmatprep.subr.mxu0 %v84
    %252 = vmatpush1.msra.mxu0 %v83
    %253 = vmatprep.subr.mxu0 %v80
    %254 = vmatpush1.msra.mxu0 %v79
    %255 = vmatprep.subr.mxu0 %v76
    %256 = vmatpush1.msra.mxu0 %v75
    %257 = vmatprep.subr.mxu0 %v200
    %258 = vmatpush2.msra.mxu0 %v199
    %259 = vmatprep.subr.mxu0 %v196
    %260 = vmatpush2.msra.mxu0 %v195
    %261 = vmatprep.subr.mxu0 %v192
    %262 = vmatpush2.msra.mxu0 %v191
    %263 = vmatprep.subr.mxu0 %v188
    %264 = vmatpush2.msra.mxu0 %v187
    %265 = vmatprep.subr.mxu0 %v184
    %266 = vmatpush2.msra.mxu0 %v183
    %267 = vmatprep.subr.mxu0 %v180
    %268 = vmatpush2.msra.mxu0 %v179
    %269 = vmatprep.subr.mxu0 %v176
    %270 = vmatpush2.msra.mxu0 %v175
    %271 = vmatprep.subr.mxu0 %v172
    %272 = vmatpush2.msra.mxu0 %v171
    %273 = vmatprep.subr.mxu0 %v168
    %274 = vmatpush2.msra.mxu0 %v167
    %275 = vmatprep.subr.mxu0 %v164
    %276 = vmatpush2.msra.mxu0 %v163
    %277 = vmatprep.subr.mxu0 %v160
    %278 = vmatpush2.msra.mxu0 %v159
    %279 = vmatprep.subr.mxu0 %v156
    %280 = vmatpush2.msra.mxu0 %v155
    %281 = vmatprep.subr.mxu0 %v152
    %282 = vmatpush2.msra.mxu0 %v151
    %283 = vmatprep.subr.mxu0 %v148
    %284 = vmatpush2.msra.mxu0 %v147
    %285 = vmatprep.subr.mxu0 %v144
    %286 = vmatpush2.msra.mxu0 %v143
    %287 = vmatprep.subr.mxu0 %v140
    %288 = vmatpush2.msra.mxu0 %v139
    %289 = vmatprep.mubr.f32.mxu0 %v73
    %290 = vmatmul.mubr.f32.gmra.mxu0 %v72
    %v291 = vpop.f32.mrf.mxu0
    %v292 = vadd.f32 %v208, %v291
    %v293 = vpop.f32.mrf.mxu0
    %v294 = vadd.f32 %v212, %v293
    %295 = vdwg.mxu0
    %296 = vmatprep.subr.mxu0 %v138
    %297 = vmatpush1.msra.mxu0 %v137
    %298 = vmatprep.subr.mxu0 %v134
    %299 = vmatpush1.msra.mxu0 %v133
    %300 = vmatprep.subr.mxu0 %v130
    %301 = vmatpush1.msra.mxu0 %v129
    %302 = vmatprep.subr.mxu0 %v126
    %303 = vmatpush1.msra.mxu0 %v125
    %304 = vmatprep.subr.mxu0 %v122
    %305 = vmatpush1.msra.mxu0 %v121
    %306 = vmatprep.subr.mxu0 %v118
    %307 = vmatpush1.msra.mxu0 %v117
    %308 = vmatprep.subr.mxu0 %v114
    %309 = vmatpush1.msra.mxu0 %v113
    %310 = vmatprep.subr.mxu0 %v110
    %311 = vmatpush1.msra.mxu0 %v109
    %312 = vmatprep.subr.mxu0 %v106
    %313 = vmatpush1.msra.mxu0 %v105
    %314 = vmatprep.subr.mxu0 %v102
    %315 = vmatpush1.msra.mxu0 %v101
    %316 = vmatprep.subr.mxu0 %v98
    %317 = vmatpush1.msra.mxu0 %v97
    %318 = vmatprep.subr.mxu0 %v94
    %319 = vmatpush1.msra.mxu0 %v93
    %320 = vmatprep.subr.mxu0 %v90
    %321 = vmatpush1.msra.mxu0 %v89
    %322 = vmatprep.subr.mxu0 %v86
    %323 = vmatpush1.msra.mxu0 %v85
    %324 = vmatprep.subr.mxu0 %v82
    %325 = vmatpush1.msra.mxu0 %v81
    %326 = vmatprep.subr.mxu0 %v78
    %327 = vmatpush1.msra.mxu0 %v77
    %328 = vmatprep.subr.mxu0 %v202
    %329 = vmatpush2.msra.mxu0 %v201
    %330 = vmatprep.subr.mxu0 %v198
    %331 = vmatpush2.msra.mxu0 %v197
    %332 = vmatprep.subr.mxu0 %v194
    %333 = vmatpush2.msra.mxu0 %v193
    %334 = vmatprep.subr.mxu0 %v190
    %335 = vmatpush2.msra.mxu0 %v189
    %336 = vmatprep.subr.mxu0 %v186
    %337 = vmatpush2.msra.mxu0 %v185
    %338 = vmatprep.subr.mxu0 %v182
    %339 = vmatpush2.msra.mxu0 %v181
    %340 = vmatprep.subr.mxu0 %v178
    %341 = vmatpush2.msra.mxu0 %v177
    %342 = vmatprep.subr.mxu0 %v174
    %343 = vmatpush2.msra.mxu0 %v173
    %344 = vmatprep.subr.mxu0 %v170
    %345 = vmatpush2.msra.mxu0 %v169
    %346 = vmatprep.subr.mxu0 %v166
    %347 = vmatpush2.msra.mxu0 %v165
    %348 = vmatprep.subr.mxu0 %v162
    %349 = vmatpush2.msra.mxu0 %v161
    %350 = vmatprep.subr.mxu0 %v158
    %351 = vmatpush2.msra.mxu0 %v157
    %352 = vmatprep.subr.mxu0 %v154
    %353 = vmatpush2.msra.mxu0 %v153
    %354 = vmatprep.subr.mxu0 %v150
    %355 = vmatpush2.msra.mxu0 %v149
    %356 = vmatprep.subr.mxu0 %v146
    %357 = vmatpush2.msra.mxu0 %v145
    %358 = vmatprep.subr.mxu0 %v142
    %359 = vmatpush2.msra.mxu0 %v141
    %360 = vmatprep.mubr.f32.mxu0 %v73
    %361 = vmatmul.mubr.f32.gmra.mxu0 %v72
    %v362 = vpop.f32.mrf.mxu0
    %v363 = vadd.f32 %v216, %v362
    %v364 = vpop.f32.mrf.mxu0
    %v365 = vadd.f32 %v220, %v364
    %366 = vdwg.mxu0
    %v367 = vxor.u32 %v292, 2147483648
    %v368 = vmul.f32 %v367, 1.442695
    %v369 = vpow.pop %v368
    %v370 = vadd.f32 %v369, 1.0
    %v371 = vrcp.pop %v370
    %v372 = vmul.f32 1.0, %v371
    %v373 = vxor.u32 %v294, 2147483648
    %v374 = vmul.f32 %v373, 1.442695
    %v375 = vpow.pop %v374
    %v376 = vadd.f32 %v375, 1.0
    %v377 = vrcp.pop %v376
    %v378 = vmul.f32 1.0, %v377
    %v379 = vtanh.pop %v363
    %v380 = vxor.u32 %v365, 2147483648
    %v381 = vmul.f32 %v380, 1.442695
    %v382 = vpow.pop %v381
    %v383 = vadd.f32 %v382, 1.0
    %v384 = vrcp.pop %v383
    %v385 = vmul.f32 1.0, %v384
    %v386 = vmul.f32 %v378, %v74
    %v387 = vmul.f32 %v372, %v379
    %v388 = vadd.f32 %v386, %v387
    %v389 = vtanh.pop %v388
    %v390 = vmul.f32 %v385, %v389
    %391 = vst [vmem:[%s8] sm:$0xff] %v390
    %392 = vst [vmem:[#allocation9] sm:$0xff] %v388
    %s393 = scalar_lea.vmem %s5, 8
    %v394 = vld [vmem:[%s393] sm:$0xff]
    %s395 = scalar_lea.vmem [#allocation7], 8
    %v396 = vld [vmem:[%s395] sm:$0xff]
    %s397 = scalar_lea.vmem [#allocation2], 1024
    %v398 = vld [vmem:[%s397] sm:$0xff]
    %v399 = vld [vmem:[%s397 + $0x8] sm:$0xff]
    %v400 = vld [vmem:[%s397 + $0x10] sm:$0xff]
    %v401 = vld [vmem:[%s397 + $0x18] sm:$0xff]
    %v402 = vld [vmem:[%s397 + $0x20] sm:$0xff]
    %v403 = vld [vmem:[%s397 + $0x28] sm:$0xff]
    %v404 = vld [vmem:[%s397 + $0x30] sm:$0xff]
    %v405 = vld [vmem:[%s397 + $0x38] sm:$0xff]
    %v406 = vld [vmem:[%s397 + $0x40] sm:$0xff]
    %v407 = vld [vmem:[%s397 + $0x48] sm:$0xff]
    %v408 = vld [vmem:[%s397 + $0x50] sm:$0xff]
    %v409 = vld [vmem:[%s397 + $0x58] sm:$0xff]
    %v410 = vld [vmem:[%s397 + $0x60] sm:$0xff]
    %v411 = vld [vmem:[%s397 + $0x68] sm:$0xff]
    %v412 = vld [vmem:[%s397 + $0x70] sm:$0xff]
    %v413 = vld [vmem:[%s397 + $0x78] sm:$0xff]
    %v414 = vld [vmem:[%s397 + $0x80] sm:$0xff]
    %v415 = vld [vmem:[%s397 + $0x88] sm:$0xff]
    %v416 = vld [vmem:[%s397 + $0x90] sm:$0xff]
    %v417 = vld [vmem:[%s397 + $0x98] sm:$0xff]
    %v418 = vld [vmem:[%s397 + $0xa0] sm:$0xff]
    %v419 = vld [vmem:[%s397 + $0xa8] sm:$0xff]
    %v420 = vld [vmem:[%s397 + $0xb0] sm:$0xff]
    %v421 = vld [vmem:[%s397 + $0xb8] sm:$0xff]
    %v422 = vld [vmem:[%s397 + $0xc0] sm:$0xff]
    %v423 = vld [vmem:[%s397 + $0xc8] sm:$0xff]
    %v424 = vld [vmem:[%s397 + $0xd0] sm:$0xff]
    %v425 = vld [vmem:[%s397 + $0xd8] sm:$0xff]
    %v426 = vld [vmem:[%s397 + $0xe0] sm:$0xff]
    %v427 = vld [vmem:[%s397 + $0xe8] sm:$0xff]
    %v428 = vld [vmem:[%s397 + $0xf0] sm:$0xff]
    %v429 = vld [vmem:[%s397 + $0xf8] sm:$0xff]
    %v430 = vld [vmem:[%s397 + $0x100] sm:$0xff]
    %v431 = vld [vmem:[%s397 + $0x108] sm:$0xff]
    %v432 = vld [vmem:[%s397 + $0x110] sm:$0xff]
    %v433 = vld [vmem:[%s397 + $0x118] sm:$0xff]
    %v434 = vld [vmem:[%s397 + $0x120] sm:$0xff]
    %v435 = vld [vmem:[%s397 + $0x128] sm:$0xff]
    %v436 = vld [vmem:[%s397 + $0x130] sm:$0xff]
    %v437 = vld [vmem:[%s397 + $0x138] sm:$0xff]
    %v438 = vld [vmem:[%s397 + $0x140] sm:$0xff]
    %v439 = vld [vmem:[%s397 + $0x148] sm:$0xff]
    %v440 = vld [vmem:[%s397 + $0x150] sm:$0xff]
    %v441 = vld [vmem:[%s397 + $0x158] sm:$0xff]
    %v442 = vld [vmem:[%s397 + $0x160] sm:$0xff]
    %v443 = vld [vmem:[%s397 + $0x168] sm:$0xff]
    %v444 = vld [vmem:[%s397 + $0x170] sm:$0xff]
    %v445 = vld [vmem:[%s397 + $0x178] sm:$0xff]
    %v446 = vld [vmem:[%s397 + $0x180] sm:$0xff]
    %v447 = vld [vmem:[%s397 + $0x188] sm:$0xff]
    %v448 = vld [vmem:[%s397 + $0x190] sm:$0xff]
    %v449 = vld [vmem:[%s397 + $0x198] sm:$0xff]
    %v450 = vld [vmem:[%s397 + $0x1a0] sm:$0xff]
    %v451 = vld [vmem:[%s397 + $0x1a8] sm:$0xff]
    %v452 = vld [vmem:[%s397 + $0x1b0] sm:$0xff]
    %v453 = vld [vmem:[%s397 + $0x1b8] sm:$0xff]
    %v454 = vld [vmem:[%s397 + $0x1c0] sm:$0xff]
    %v455 = vld [vmem:[%s397 + $0x1c8] sm:$0xff]
    %v456 = vld [vmem:[%s397 + $0x1d0] sm:$0xff]
    %v457 = vld [vmem:[%s397 + $0x1d8] sm:$0xff]
    %v458 = vld [vmem:[%s397 + $0x1e0] sm:$0xff]
    %v459 = vld [vmem:[%s397 + $0x1e8] sm:$0xff]
    %v460 = vld [vmem:[%s397 + $0x1f0] sm:$0xff]
    %v461 = vld [vmem:[%s397 + $0x1f8] sm:$0xff]
    %v462 = vld [vmem:[%s397 + $0x200] sm:$0xff]
    %v463 = vld [vmem:[%s397 + $0x208] sm:$0xff]
    %v464 = vld [vmem:[%s397 + $0x210] sm:$0xff]
    %v465 = vld [vmem:[%s397 + $0x218] sm:$0xff]
    %v466 = vld [vmem:[%s397 + $0x220] sm:$0xff]
    %v467 = vld [vmem:[%s397 + $0x228] sm:$0xff]
    %v468 = vld [vmem:[%s397 + $0x230] sm:$0xff]
    %v469 = vld [vmem:[%s397 + $0x238] sm:$0xff]
    %v470 = vld [vmem:[%s397 + $0x240] sm:$0xff]
    %v471 = vld [vmem:[%s397 + $0x248] sm:$0xff]
    %v472 = vld [vmem:[%s397 + $0x250] sm:$0xff]
    %v473 = vld [vmem:[%s397 + $0x258] sm:$0xff]
    %v474 = vld [vmem:[%s397 + $0x260] sm:$0xff]
    %v475 = vld [vmem:[%s397 + $0x268] sm:$0xff]
    %v476 = vld [vmem:[%s397 + $0x270] sm:$0xff]
    %v477 = vld [vmem:[%s397 + $0x278] sm:$0xff]
    %v478 = vld [vmem:[%s397 + $0x280] sm:$0xff]
    %v479 = vld [vmem:[%s397 + $0x288] sm:$0xff]
    %v480 = vld [vmem:[%s397 + $0x290] sm:$0xff]
    %v481 = vld [vmem:[%s397 + $0x298] sm:$0xff]
    %v482 = vld [vmem:[%s397 + $0x2a0] sm:$0xff]
    %v483 = vld [vmem:[%s397 + $0x2a8] sm:$0xff]
    %v484 = vld [vmem:[%s397 + $0x2b0] sm:$0xff]
    %v485 = vld [vmem:[%s397 + $0x2b8] sm:$0xff]
    %v486 = vld [vmem:[%s397 + $0x2c0] sm:$0xff]
    %v487 = vld [vmem:[%s397 + $0x2c8] sm:$0xff]
    %v488 = vld [vmem:[%s397 + $0x2d0] sm:$0xff]
    %v489 = vld [vmem:[%s397 + $0x2d8] sm:$0xff]
    %v490 = vld [vmem:[%s397 + $0x2e0] sm:$0xff]
    %v491 = vld [vmem:[%s397 + $0x2e8] sm:$0xff]
    %v492 = vld [vmem:[%s397 + $0x2f0] sm:$0xff]
    %v493 = vld [vmem:[%s397 + $0x2f8] sm:$0xff]
    %v494 = vld [vmem:[%s397 + $0x300] sm:$0xff]
    %v495 = vld [vmem:[%s397 + $0x308] sm:$0xff]
    %v496 = vld [vmem:[%s397 + $0x310] sm:$0xff]
    %v497 = vld [vmem:[%s397 + $0x318] sm:$0xff]
    %v498 = vld [vmem:[%s397 + $0x320] sm:$0xff]
    %v499 = vld [vmem:[%s397 + $0x328] sm:$0xff]
    %v500 = vld [vmem:[%s397 + $0x330] sm:$0xff]
    %v501 = vld [vmem:[%s397 + $0x338] sm:$0xff]
    %v502 = vld [vmem:[%s397 + $0x340] sm:$0xff]
    %v503 = vld [vmem:[%s397 + $0x348] sm:$0xff]
    %v504 = vld [vmem:[%s397 + $0x350] sm:$0xff]
    %v505 = vld [vmem:[%s397 + $0x358] sm:$0xff]
    %v506 = vld [vmem:[%s397 + $0x360] sm:$0xff]
    %v507 = vld [vmem:[%s397 + $0x368] sm:$0xff]
    %v508 = vld [vmem:[%s397 + $0x370] sm:$0xff]
    %v509 = vld [vmem:[%s397 + $0x378] sm:$0xff]
    %v510 = vld [vmem:[%s397 + $0x380] sm:$0xff]
    %v511 = vld [vmem:[%s397 + $0x388] sm:$0xff]
    %v512 = vld [vmem:[%s397 + $0x390] sm:$0xff]
    %v513 = vld [vmem:[%s397 + $0x398] sm:$0xff]
    %v514 = vld [vmem:[%s397 + $0x3a0] sm:$0xff]
    %v515 = vld [vmem:[%s397 + $0x3a8] sm:$0xff]
    %v516 = vld [vmem:[%s397 + $0x3b0] sm:$0xff]
    %v517 = vld [vmem:[%s397 + $0x3b8] sm:$0xff]
    %v518 = vld [vmem:[%s397 + $0x3c0] sm:$0xff]
    %v519 = vld [vmem:[%s397 + $0x3c8] sm:$0xff]
    %v520 = vld [vmem:[%s397 + $0x3d0] sm:$0xff]
    %v521 = vld [vmem:[%s397 + $0x3d8] sm:$0xff]
    %v522 = vld [vmem:[%s397 + $0x3e0] sm:$0xff]
    %v523 = vld [vmem:[%s397 + $0x3e8] sm:$0xff]
    %v524 = vld [vmem:[%s397 + $0x3f0] sm:$0xff]
    %v525 = vld [vmem:[%s397 + $0x3f8] sm:$0xff]
    %s526 = scalar_lea.vmem %s2, 4
    %v527 = vld [vmem:[%s526] sm:$0xf]
    %v529 = vlaneseq
    %v530 = vshrl.u32 %v529, 7
    %v531 = vsub.s32 0, %v530
    %v532 = vrot.slane %v527, %v531
    %v533 = vlaneseq
    %v534 = vshrl.u32 %v533, 7
    %v535 = vsub.s32 1, %v534
    %v536 = vrot.slane %v527, %v535
    %v537 = vlaneseq
    %v538 = vshrl.u32 %v537, 7
    %v539 = vsub.s32 2, %v538
    %v540 = vrot.slane %v527, %v539
    %v541 = vlaneseq
    %v542 = vshrl.u32 %v541, 7
    %v543 = vsub.s32 3, %v542
    %v544 = vrot.slane %v527, %v543
    %549 = vmatprep.subr.mxu0 %v459
    %550 = vmatpush1.msra.mxu0 %v458
    %551 = vmatprep.subr.mxu0 %v455
    %552 = vmatpush1.msra.mxu0 %v454
    %553 = vmatprep.subr.mxu0 %v451
    %554 = vmatpush1.msra.mxu0 %v450
    %555 = vmatprep.subr.mxu0 %v447
    %556 = vmatpush1.msra.mxu0 %v446
    %557 = vmatprep.subr.mxu0 %v443
    %558 = vmatpush1.msra.mxu0 %v442
    %559 = vmatprep.subr.mxu0 %v439
    %560 = vmatpush1.msra.mxu0 %v438
    %561 = vmatprep.subr.mxu0 %v435
    %562 = vmatpush1.msra.mxu0 %v434
    %563 = vmatprep.subr.mxu0 %v431
    %564 = vmatpush1.msra.mxu0 %v430
    %565 = vmatprep.subr.mxu0 %v427
    %566 = vmatpush1.msra.mxu0 %v426
    %567 = vmatprep.subr.mxu0 %v423
    %568 = vmatpush1.msra.mxu0 %v422
    %569 = vmatprep.subr.mxu0 %v419
    %570 = vmatpush1.msra.mxu0 %v418
    %571 = vmatprep.subr.mxu0 %v415
    %572 = vmatpush1.msra.mxu0 %v414
    %573 = vmatprep.subr.mxu0 %v411
    %574 = vmatpush1.msra.mxu0 %v410
    %575 = vmatprep.subr.mxu0 %v407
    %576 = vmatpush1.msra.mxu0 %v406
    %577 = vmatprep.subr.mxu0 %v403
    %578 = vmatpush1.msra.mxu0 %v402
    %579 = vmatprep.subr.mxu0 %v399
    %580 = vmatpush1.msra.mxu0 %v398
    %581 = vmatprep.subr.mxu0 %v523
    %582 = vmatpush2.msra.mxu0 %v522
    %583 = vmatprep.subr.mxu0 %v519
    %584 = vmatpush2.msra.mxu0 %v518
    %585 = vmatprep.subr.mxu0 %v515
    %586 = vmatpush2.msra.mxu0 %v514
    %587 = vmatprep.subr.mxu0 %v511
    %588 = vmatpush2.msra.mxu0 %v510
    %589 = vmatprep.subr.mxu0 %v507
    %590 = vmatpush2.msra.mxu0 %v506
    %591 = vmatprep.subr.mxu0 %v503
    %592 = vmatpush2.msra.mxu0 %v502
    %593 = vmatprep.subr.mxu0 %v499
    %594 = vmatpush2.msra.mxu0 %v498
    %595 = vmatprep.subr.mxu0 %v495
    %596 = vmatpush2.msra.mxu0 %v494
    %597 = vmatprep.subr.mxu0 %v491
    %598 = vmatpush2.msra.mxu0 %v490
    %599 = vmatprep.subr.mxu0 %v487
    %600 = vmatpush2.msra.mxu0 %v486
    %601 = vmatprep.subr.mxu0 %v483
    %602 = vmatpush2.msra.mxu0 %v482
    %603 = vmatprep.subr.mxu0 %v479
    %604 = vmatpush2.msra.mxu0 %v478
    %605 = vmatprep.subr.mxu0 %v475
    %606 = vmatpush2.msra.mxu0 %v474
    %607 = vmatprep.subr.mxu0 %v471
    %608 = vmatpush2.msra.mxu0 %v470
    %609 = vmatprep.subr.mxu0 %v467
    %610 = vmatpush2.msra.mxu0 %v466
    %611 = vmatprep.subr.mxu0 %v463
    %612 = vmatpush2.msra.mxu0 %v462
    %613 = vmatprep.mubr.f32.mxu0 %v394
    %614 = vmatmul.mubr.f32.gmra.mxu0 %v390
    %v615 = vpop.f32.mrf.mxu0
    %v616 = vadd.f32 %v532, %v615
    %v617 = vpop.f32.mrf.mxu0
    %v618 = vadd.f32 %v536, %v617
    %619 = vdwg.mxu0
    %620 = vmatprep.subr.mxu0 %v461
    %621 = vmatpush1.msra.mxu0 %v460
    %622 = vmatprep.subr.mxu0 %v457
    %623 = vmatpush1.msra.mxu0 %v456
    %624 = vmatprep.subr.mxu0 %v453
    %625 = vmatpush1.msra.mxu0 %v452
    %626 = vmatprep.subr.mxu0 %v449
    %627 = vmatpush1.msra.mxu0 %v448
    %628 = vmatprep.subr.mxu0 %v445
    %629 = vmatpush1.msra.mxu0 %v444
    %630 = vmatprep.subr.mxu0 %v441
    %631 = vmatpush1.msra.mxu0 %v440
    %632 = vmatprep.subr.mxu0 %v437
    %633 = vmatpush1.msra.mxu0 %v436
    %634 = vmatprep.subr.mxu0 %v433
    %635 = vmatpush1.msra.mxu0 %v432
    %636 = vmatprep.subr.mxu0 %v429
    %637 = vmatpush1.msra.mxu0 %v428
    %638 = vmatprep.subr.mxu0 %v425
    %639 = vmatpush1.msra.mxu0 %v424
    %640 = vmatprep.subr.mxu0 %v421
    %641 = vmatpush1.msra.mxu0 %v420
    %642 = vmatprep.subr.mxu0 %v417
    %643 = vmatpush1.msra.mxu0 %v416
    %644 = vmatprep.subr.mxu0 %v413
    %645 = vmatpush1.msra.mxu0 %v412
    %646 = vmatprep.subr.mxu0 %v409
    %647 = vmatpush1.msra.mxu0 %v408
    %648 = vmatprep.subr.mxu0 %v405
    %649 = vmatpush1.msra.mxu0 %v404
    %650 = vmatprep.subr.mxu0 %v401
    %651 = vmatpush1.msra.mxu0 %v400
    %652 = vmatprep.subr.mxu0 %v525
    %653 = vmatpush2.msra.mxu0 %v524
    %654 = vmatprep.subr.mxu0 %v521
    %655 = vmatpush2.msra.mxu0 %v520
    %656 = vmatprep.subr.mxu0 %v517
    %657 = vmatpush2.msra.mxu0 %v516
    %658 = vmatprep.subr.mxu0 %v513
    %659 = vmatpush2.msra.mxu0 %v512
    %660 = vmatprep.subr.mxu0 %v509
    %661 = vmatpush2.msra.mxu0 %v508
    %662 = vmatprep.subr.mxu0 %v505
    %663 = vmatpush2.msra.mxu0 %v504
    %664 = vmatprep.subr.mxu0 %v501
    %665 = vmatpush2.msra.mxu0 %v500
    %666 = vmatprep.subr.mxu0 %v497
    %667 = vmatpush2.msra.mxu0 %v496
    %668 = vmatprep.subr.mxu0 %v493
    %669 = vmatpush2.msra.mxu0 %v492
    %670 = vmatprep.subr.mxu0 %v489
    %671 = vmatpush2.msra.mxu0 %v488
    %672 = vmatprep.subr.mxu0 %v485
    %673 = vmatpush2.msra.mxu0 %v484
    %674 = vmatprep.subr.mxu0 %v481
    %675 = vmatpush2.msra.mxu0 %v480
    %676 = vmatprep.subr.mxu0 %v477
    %677 = vmatpush2.msra.mxu0 %v476
    %678 = vmatprep.subr.mxu0 %v473
    %679 = vmatpush2.msra.mxu0 %v472
    %680 = vmatprep.subr.mxu0 %v469
    %681 = vmatpush2.msra.mxu0 %v468
    %682 = vmatprep.subr.mxu0 %v465
    %683 = vmatpush2.msra.mxu0 %v464
    %684 = vmatprep.mubr.f32.mxu0 %v394
    %685 = vmatmul.mubr.f32.gmra.mxu0 %v390
    %v686 = vpop.f32.mrf.mxu0
    %v687 = vadd.f32 %v540, %v686
    %v688 = vpop.f32.mrf.mxu0
    %v689 = vadd.f32 %v544, %v688
    %690 = vdwg.mxu0
    %v691 = vxor.u32 %v616, 2147483648
    %v692 = vmul.f32 %v691, 1.442695
    %v693 = vpow.pop %v692
    %v694 = vadd.f32 %v693, 1.0
    %v695 = vrcp.pop %v694
    %v696 = vmul.f32 1.0, %v695
    %v697 = vxor.u32 %v618, 2147483648
    %v698 = vmul.f32 %v697, 1.442695
    %v699 = vpow.pop %v698
    %v700 = vadd.f32 %v699, 1.0
    %v701 = vrcp.pop %v700
    %v702 = vmul.f32 1.0, %v701
    %v703 = vtanh.pop %v687
    %v704 = vxor.u32 %v689, 2147483648
    %v705 = vmul.f32 %v704, 1.442695
    %v706 = vpow.pop %v705
    %v707 = vadd.f32 %v706, 1.0
    %v708 = vrcp.pop %v707
    %v709 = vmul.f32 1.0, %v708
    %v710 = vmul.f32 %v702, %v396
    %v711 = vmul.f32 %v696, %v703
    %v712 = vadd.f32 %v710, %v711
    %v713 = vtanh.pop %v712
    %v714 = vmul.f32 %v709, %v713
    %s715 = scalar_lea.vmem %s8, 8
    %716 = vst [vmem:[%s715] sm:$0xff] %v714
    %s717 = scalar_lea.vmem [#allocation9], 8
    %718 = vst [vmem:[%s717] sm:$0xff] %v712
    %v719 = vld [vmem:[#allocation5] sm:$0xff]
    %v720 = vld [vmem:[#allocation5 + $0x8] sm:$0xff]
    %v721 = vld [vmem:[#allocation5 + $0x10] sm:$0xff]
    %v722 = vld [vmem:[#allocation5 + $0x18] sm:$0xff]
    %v723 = vld [vmem:[#allocation5 + $0x20] sm:$0xff]
    %v724 = vld [vmem:[#allocation5 + $0x28] sm:$0xff]
    %v725 = vld [vmem:[#allocation5 + $0x30] sm:$0xff]
    %v726 = vld [vmem:[#allocation5 + $0x38] sm:$0xff]
    %v727 = vld [vmem:[#allocation5 + $0x40] sm:$0xff]
    %v728 = vld [vmem:[#allocation5 + $0x48] sm:$0xff]
    %v729 = vld [vmem:[#allocation5 + $0x50] sm:$0xff]
    %v730 = vld [vmem:[#allocation5 + $0x58] sm:$0xff]
    %v731 = vld [vmem:[#allocation5 + $0x60] sm:$0xff]
    %v732 = vld [vmem:[#allocation5 + $0x68] sm:$0xff]
    %v733 = vld [vmem:[#allocation5 + $0x70] sm:$0xff]
    %v734 = vld [vmem:[#allocation5 + $0x78] sm:$0xff]
    %v735 = vld [vmem:[%s4] sm:$0x1]
    %v737 = vlaneseq
    %v738 = vshrl.u32 %v737, 7
    %v739 = vsub.s32 0, %v738
    %v740 = vrot.slane %v735, %v739
    %742 = vmatprep.subr.mxu0 0.0
    %743 = vmatpush1.msra.mxu0 %v734
    %744 = vmatprep.subr.mxu0 0.0
    %745 = vmatpush1.msra.mxu0 %v733
    %746 = vmatprep.subr.mxu0 0.0
    %747 = vmatpush1.msra.mxu0 %v732
    %748 = vmatprep.subr.mxu0 0.0
    %749 = vmatpush1.msra.mxu0 %v731
    %750 = vmatprep.subr.mxu0 0.0
    %751 = vmatpush1.msra.mxu0 %v730
    %752 = vmatprep.subr.mxu0 0.0
    %753 = vmatpush1.msra.mxu0 %v729
    %754 = vmatprep.subr.mxu0 0.0
    %755 = vmatpush1.msra.mxu0 %v728
    %756 = vmatprep.subr.mxu0 0.0
    %757 = vmatpush1.msra.mxu0 %v727
    %758 = vmatprep.subr.mxu0 0.0
    %759 = vmatpush1.msra.mxu0 %v726
    %760 = vmatprep.subr.mxu0 0.0
    %761 = vmatpush1.msra.mxu0 %v725
    %762 = vmatprep.subr.mxu0 0.0
    %763 = vmatpush1.msra.mxu0 %v724
    %764 = vmatprep.subr.mxu0 0.0
    %765 = vmatpush1.msra.mxu0 %v723
    %766 = vmatprep.subr.mxu0 0.0
    %767 = vmatpush1.msra.mxu0 %v722
    %768 = vmatprep.subr.mxu0 0.0
    %769 = vmatpush1.msra.mxu0 %v721
    %770 = vmatprep.subr.mxu0 0.0
    %771 = vmatpush1.msra.mxu0 %v720
    %772 = vmatprep.subr.mxu0 0.0
    %773 = vmatpush1.msra.mxu0 %v719
    %774 = vmatprep.subr.mxu0 0.0
    %775 = vmatpush2.msra.mxu0 0.0
    %776 = vmatprep.subr.mxu0 0.0
    %777 = vmatpush2.msra.mxu0 0.0
    %778 = vmatprep.subr.mxu0 0.0
    %779 = vmatpush2.msra.mxu0 0.0
    %780 = vmatprep.subr.mxu0 0.0
    %781 = vmatpush2.msra.mxu0 0.0
    %782 = vmatprep.subr.mxu0 0.0
    %783 = vmatpush2.msra.mxu0 0.0
    %784 = vmatprep.subr.mxu0 0.0
    %785 = vmatpush2.msra.mxu0 0.0
    %786 = vmatprep.subr.mxu0 0.0
    %787 = vmatpush2.msra.mxu0 0.0
    %788 = vmatprep.subr.mxu0 0.0
    %789 = vmatpush2.msra.mxu0 0.0
    %790 = vmatprep.subr.mxu0 0.0
    %791 = vmatpush2.msra.mxu0 0.0
    %792 = vmatprep.subr.mxu0 0.0
    %793 = vmatpush2.msra.mxu0 0.0
    %794 = vmatprep.subr.mxu0 0.0
    %795 = vmatpush2.msra.mxu0 0.0
    %796 = vmatprep.subr.mxu0 0.0
    %797 = vmatpush2.msra.mxu0 0.0
    %798 = vmatprep.subr.mxu0 0.0
    %799 = vmatpush2.msra.mxu0 0.0
    %800 = vmatprep.subr.mxu0 0.0
    %801 = vmatpush2.msra.mxu0 0.0
    %802 = vmatprep.subr.mxu0 0.0
    %803 = vmatpush2.msra.mxu0 0.0
    %804 = vmatprep.subr.mxu0 0.0
    %805 = vmatpush2.msra.mxu0 0.0
    %806 = vmatprep.mubr.f32.mxu0 0.0
    %807 = vmatmul.mubr.f32.gmra.mxu0 %v714
    %v808 = vpop.f32.mrf.mxu0
    %v809 = vadd.f32 %v740, %v808
    %v810 = vpop.f32.mrf.mxu0
    %811 = vdwg.mxu0
    %v812 = vtanh.pop %v809
    %813 = vst [vmem:[#allocation8] sm:$0xff] %v812
    // Predicated region
    $region42: #{lstm_step.1} parent=1 // pred_check
      _
    $region43: #{lstm_step.1} parent=1 // pred_check_branch
      %815 = sbr.rel (0) target = $region45
    $region44: #{lstm_step.1} parent=1 // pred_region
      %s817 = ssub.s32 128, 128
      %818 = vsyncadd [#allocation4], %s817
      %s820 = sshll.u32 [#allocation8], 4
      %s821 = int_to_ptr.vmem [resolvable:$true] %s820
      %823 = dma.vmem_to_hbm [thread:$0]  %s821, 128, %s7, [#allocation4]
    $region45: #{lstm_step.1} parent=1 // pred_fallthru
      _
    // Predicated region
    $region46: #{lstm_step.1} parent=1 // pred_check
      _
    $region47: #{lstm_step.1} parent=1 // pred_check_branch
      %825 = sbr.rel (0) target = $region49
    $region48: #{lstm_step.1} parent=1 // pred_region
      _
    $region49: #{lstm_step.1} parent=1 // pred_fallthru
      _
    // Predicated region
    $region50: #{lstm_step.1} parent=1 // pred_check
      _
    $region51: #{lstm_step.1} parent=1 // pred_check_branch
      %827 = sbr.rel (0) target = $region53
    $region52: #{lstm_step.1} parent=1 // pred_region
      %s829 = ssub.s32 256, 256
      %830 = vsyncadd [#allocation10], %s829
      %s831 = sshll.u32 [#allocation9], 4
      %s832 = int_to_ptr.vmem [resolvable:$true] %s831
      %837 = dma.vmem_to_hbm [thread:$0]  %s832, 256, %s9, [#allocation10], 128, 128, 8
    $region53: #{lstm_step.1} parent=1 // pred_fallthru
      _
    // Predicated region
    $region54: #{lstm_step.1} parent=1 // pred_check
      _
    $region55: #{lstm_step.1} parent=1 // pred_check_branch
      %839 = sbr.rel (0) target = $region57
    $region56: #{lstm_step.1} parent=1 // pred_region
      %840 = dma.done [#allocation4], 128
    $region57: #{lstm_step.1} parent=1 // pred_fallthru
      _
    // Predicated region
    $region58: #{lstm_step.1} parent=1 // pred_check
      _
    $region59: #{lstm_step.1} parent=1 // pred_check_branch
      %842 = sbr.rel (0) target = $region61
    $region60: #{lstm_step.1} parent=1 // pred_region
      _
    $region61: #{lstm_step.1} parent=1 // pred_fallthru
      _
    // Predicated region
    $region62: #{lstm_step.1} parent=1 // pred_check
      _
    $region63: #{lstm_step.1} parent=1 // pred_check_branch
      %844 = sbr.rel (0) target = $region65
    $region64: #{lstm_step.1} parent=1 // pred_region
      %845 = dma.done [#allocation10], 256
    $region65: #{lstm_step.1} parent=1 // pred_fallthru
      _
    %846 = vsyncpa [#allocation3], 1
    %847 = vsyncpa [#allocation6], 1
    %848 = vsyncpa [#allocation4], 1
    %849 = vsyncpa [#allocation10], 1

</llo_original>
